<compile_context>
chip_gen: v7x
topology: tpu7x:2x2x1
jax: 0.10.0
libtpu: 0.0.40
codegen_flags: <defaults>
</compile_context>

<pallas_src>
import jax
import jax.numpy as jnp
from jax.experimental import pallas as pl
from jax.experimental.pallas import tpu as pltpu


def _round_up(x: int, m: int) -> int:
    return ((x + m - 1) // m) * m


def _chip_config():
    """Per-generation knobs: (two_tc, vmem_limit_bytes, mxu_mult, class_block)."""
    try:
        kind = jax.devices()[0].device_kind.lower()
    except Exception:  # pragma: no cover - defensive
        kind = ""
    is_v7 = "v7" in kind
    # v5e/v6e have 1 TensorCore; v7x has 2 TCs; v4/v5p megacore also legitimately
    # shard "parallel" grid axes across cores.
    two_tc = is_v7 or ("v4" in kind) or ("v5p" in kind)
    # v7x: 64 MiB VMEM/TC -> plan against ~48 MiB.  v5e/v6e: 128 MiB -> ~96 MiB.
    vmem_limit = (48 if is_v7 else 96) * 1024 * 1024
    try:
        info = pltpu.get_tpu_info()
        phys = getattr(info, "vmem_capacity_bytes", None)
        if phys:
            vmem_limit = min(vmem_limit, (int(phys) * 3) // 4)
    except Exception:  # pragma: no cover - defensive
        pass
    newer = ("v6" in kind) or is_v7
    mxu_mult = 256 if newer else 128      # MXU height -> batch-tile rounding
    class_block = 256 if newer else 128   # Bc for the blocked cumsum
    return two_tc, vmem_limit, mxu_mult, class_block


def _make_emd_kernel(nB: int, Bc: int, valid_last: int, tb: int):
    """Kernel accumulating sum(cdf_diff**2) over batch tiles.

    Grid = (ncores, n_tiles_per_core).
      axis 0 ("parallel"):  independent partial sums, one output slot each.
      axis 1 ("arbitrary"): batch-tile reduction into a VMEM vector scratch.
    """

    def kernel(tri_ref, est_ref, tgt_ref, out_ref, acc_ref):
        i = pl.program_id(1)

        @pl.when(i == 0)
        def _init():
            acc_ref[...] = jnp.zeros_like(acc_ref)

        tri = tri_ref[...].astype(jnp.float32)  # bf16 {0,1} -> exact in f32
        d = est_ref[...].astype(jnp.float32) - tgt_ref[...].astype(jnp.float32)

        rowsum = jnp.zeros((tb, 1), jnp.float32)
        carry = jnp.zeros((tb, 1), jnp.float32)
        for kb in range(nB):  # static, short class-block loop (unrolled)
            dk = d[:, kb * Bc:(kb + 1) * Bc]
            # Intra-block cumsum == matmul with a Bc x Bc upper-tri ones matrix.
            ck = jnp.dot(dk, tri, preferred_element_type=jnp.float32)
            if nB > 1:
                ck = ck + carry                     # prefix from earlier blocks
                if kb + 1 < nB:
                    carry = carry + jnp.sum(dk, axis=-1, keepdims=True)
            if kb == nB - 1 and valid_last < Bc:
                # Mask zero-padded class columns (their cdf equals the carry).
                lane = jax.lax.broadcasted_iota(jnp.int32, ck.shape, 1)
                ck = jnp.where(lane < valid_last, ck, 0.0)
            rowsum = rowsum + jnp.sum(ck * ck, axis=-1, keepdims=True)

        # Vector accumulation across batch tiles (no per-step scalar chain).
        acc_ref[...] += rowsum

        @pl.when(i == pl.num_programs(1) - 1)
        def _finalize():
            out_ref[0, 0] = jnp.sum(acc_ref[...])  # single epilogue reduce

    return kernel


def emd_loss(p_estimate: jax.Array, p_target: jax.Array, *, force_pallas: bool = False) -> jax.Array:
    assert p_estimate.shape == p_target.shape
    assert p_estimate.ndim == 2, "expected (batch, num_classes)"
    B, C = p_estimate.shape
    itemsize = jnp.dtype(p_estimate.dtype).itemsize
    denom = jnp.float32(B * C)  # true element count (padding contributes 0)

    # Tiny inputs: pallas_call launch + padding overhead dwarfs the actual work.
    if not force_pallas and B * C * itemsize < (1 << 18):
        diff = jnp.cumsum(
            p_estimate.astype(jnp.float32) - p_target.astype(jnp.float32), axis=1)
        return jnp.sqrt(jnp.mean(diff * diff))

    two_tc, vmem_limit, mxu_mult, class_block = _chip_config()

    # ---- lane packing (C < 128) vs blocked cumsum (C > class_block) ----------
    f = max(1, 128 // C)
    if f > 1:
        # Pack f samples per row -> last dim ~128 dense; block-diagonal tri.
        Ce, Bc, nB, valid_last, Cp = f * C, f * C, 1, f * C, C
    else:
        if C > class_block:
            Bc = class_block
            Cp = _round_up(C, Bc)
            nB = Cp // Bc
            valid_last = C - (nB - 1) * Bc
        else:
            Bc, Cp, nB, valid_last = C, C, 1, C
        Ce = Cp

    # tri: block-diagonal upper-triangular ones; bf16 is exact for {0,1}.
    csub = C if f > 1 else Bc
    row = jax.lax.broadcasted_iota(jnp.int32, (Bc, Bc), 0)
    col = jax.lax.broadcasted_iota(jnp.int32, (Bc, Bc), 1)
    tri = ((row // csub == col // csub) & (row % csub <= col % csub)).astype(jnp.bfloat16)

    # ---- batch tile size from a per-generation VMEM plan ---------------------
    # inputs (native itemsize, double-buffered) + f32 temporaries + tri + slack.
    per_row = 2 * 2 * Ce * itemsize + 3 * Ce * 4 + 2 * Bc * 4
    fixed = 4 * Bc * Bc + (1 << 20)            # tri (2 bufs, bf16) + acc + slack
    budget = int(vmem_limit * 0.85)
    tb = max(8, (budget - fixed) // per_row)
    # Cap unroll / compile size: <= 8192 rows and <= ~2M elements per tile.
    tb = min(tb, 8192, max(mxu_mult, (2 * 1024 * 1024) // Ce))
    if tb >= mxu_mult:
        tb = (tb // mxu_mult) * mxu_mult       # MXU-height multiple
    else:
        tb = max(8, (tb // 8) * 8)
    Br = -(-B // f)                            # packed rows actually needed
    tb = max(8, min(tb, _round_up(Br, 8)))     # don't tile past the data

    nb = -(-Br // tb)
    ncores = 2 if (two_tc and nb >= 2) else 1  # 2 streams only on multi-TC chips
    nb = _round_up(nb, ncores)
    rows = nb * tb                             # packed rows after padding
    npc = nb // ncores

    # Zero padding: padded rows contribute 0; padded class columns are masked
    # inside the kernel (their cdf equals the running carry, not zero).
    pads = ((0, rows * f - B), (0, Cp - C))
    if pads != ((0, 0), (0, 0)):
        p_estimate = jnp.pad(p_estimate, pads)
        p_target = jnp.pad(p_target, pads)
    if f > 1:
        p_estimate = p_estimate.reshape(rows, Ce)
        p_target = p_target.reshape(rows, Ce)

    kernel = _make_emd_kernel(nB, Bc, valid_last, tb)

    partials = pl.pallas_call(
        kernel,
        out_shape=jax.ShapeDtypeStruct((ncores, 1), jnp.float32),
        grid_spec=pltpu.PrefetchScalarGridSpec(
            num_scalar_prefetch=0,
            grid=(ncores, npc),
            in_specs=[
                # tri: constant block index -> DMA'd once, stays VMEM-resident.
                pl.BlockSpec((Bc, Bc), lambda c, i: (0, 0)),
                pl.BlockSpec((tb, Ce), lambda c, i, npc=npc: (c * npc + i, 0)),
                pl.BlockSpec((tb, Ce), lambda c, i, npc=npc: (c * npc + i, 0)),
            ],
            out_specs=pl.BlockSpec((1, 1), lambda c, i: (c, 0),
                                   memory_space=pltpu.SMEM),
            scratch_shapes=[pltpu.VMEM((tb, 1), jnp.float32)],
        ),
        compiler_params=pltpu.CompilerParams(
            dimension_semantics=("parallel", "arbitrary"),
            vmem_limit_bytes=vmem_limit,
        ),
        cost_estimate=pl.CostEstimate(
            flops=2 * rows * nB * Bc * Bc,
            transcendentals=0,
            bytes_accessed=2 * rows * Ce * itemsize + Bc * Bc * 2 + ncores * 4,
        ),
    )(tri, p_estimate, p_target)

    # Final sqrt(mean) over the tiny per-stream partials with the TRUE divisor.
    return jnp.sqrt(jnp.sum(partials) / denom)


def _reference(p_estimate, p_target):
    diff = jnp.cumsum(p_estimate, axis=1) - jnp.cumsum(p_target, axis=1)
    return jnp.sqrt(jnp.mean(jnp.abs(diff) ** 2))


if __name__ == "__main__":
    key = jax.random.PRNGKey(0)
    k1, k2 = jax.random.split(key)

    # Small (batch, num_classes) probability inputs, as the module intends.
    batch, num_classes = 8, 16
    p_estimate = jax.nn.softmax(jax.random.normal(k1, (batch, num_classes)), axis=1)
    p_target = jax.nn.softmax(jax.random.normal(k2, (batch, num_classes)), axis=1)
    loss = emd_loss(p_estimate, p_target, force_pallas=True)
    jax.block_until_ready(loss)
    ref = _reference(p_estimate, p_target)
    assert jnp.allclose(loss, ref, atol=1e-6, rtol=1e-5), (loss, ref)

    # Lane-packed (C < 128) + ragged-batch path.
    batch2 = 300
    e2 = jax.nn.softmax(jax.random.normal(k1, (batch2, num_classes)), axis=1)
    t2 = jax.nn.softmax(jax.random.normal(k2, (batch2, num_classes)), axis=1)
    loss2 = emd_loss(e2, t2, force_pallas=True)
    jax.block_until_ready(loss2)
    ref2 = _reference(e2, t2)
    assert jnp.allclose(loss2, ref2, atol=1e-6, rtol=1e-5), (loss2, ref2)

    # Blocked two-level cumsum path (num_classes > class block, ragged C).
    batch3, classes3 = 64, 384
    e3 = jax.nn.softmax(jax.random.normal(k1, (batch3, classes3)), axis=1)
    t3 = jax.nn.softmax(jax.random.normal(k2, (batch3, classes3)), axis=1)
    loss3 = emd_loss(e3, t3, force_pallas=True)
    jax.block_until_ready(loss3)
    ref3 = _reference(e3, t3)
    assert jnp.allclose(loss3, ref3, atol=1e-6, rtol=1e-4), (loss3, ref3)

    print("KERNEL_OK")
</pallas_src>

<mosaic_0001>
module attributes {stable_mosaic.version = 11 : i64} {
  func.func @kernel(%arg0: i32, %arg1: i32, %arg2: memref<128x128xbf16, #tpu.memory_space<vmem>>, %arg3: memref<8x128xf32, #tpu.memory_space<vmem>>, %arg4: memref<8x128xf32, #tpu.memory_space<vmem>>, %arg5: memref<1x1xf32, #tpu.memory_space<smem>>, %arg6: memref<8x1xf32, #tpu.memory_space<vmem>>) attributes {dimension_semantics = [#tpu.dimension_semantics<parallel>, #tpu.dimension_semantics<arbitrary>], iteration_bounds = array<i64: 1, 1>, scalar_prefetch = 0 : i64, scratch_operands = 1 : i64, tpu.core_type = #tpu.core_type<tc>, window_params = [{pipeline_mode = #tpu.pipeline_mode<synchronous>, transform_indices = @transform_0, window_bounds = array<i64: 128, 128>}, {transform_indices = @transform_1, window_bounds = array<i64: 8, 128>}, {transform_indices = @transform_2, window_bounds = array<i64: 8, 128>}, {transform_indices = @transform_3, window_bounds = array<i64: 1, 1>}]} {
    %c0_i32 = arith.constant 0 : i32
    %0 = arith.cmpi eq, %arg1, %c0_i32 : i32
    %1 = arith.extui %0 : i1 to i32
    %c0_i32_0 = arith.constant 0 : i32
    %2 = arith.cmpi ne, %1, %c0_i32_0 : i32
    scf.if %2 {
      %cst_14 = arith.constant 0.000000e+00 : f32
      %20 = vector.broadcast %cst_14 : f32 to vector<8x1xf32>
      %c0_15 = arith.constant 0 : index
      %c0_16 = arith.constant 0 : index
      %21 = vector.load %arg6[%c0_15, %c0_16] : memref<8x1xf32, #tpu.memory_space<vmem>>, vector<8x1xf32>
      tpu.vector_store %arg6[%c0_15, %c0_16], %20 {strides = array<i32>} : memref<8x1xf32, #tpu.memory_space<vmem>>, vector<8x1xf32>,
    } else {
    }
    %c0 = arith.constant 0 : index
    %c0_1 = arith.constant 0 : index
    %3 = vector.load %arg2[%c0, %c0_1] : memref<128x128xbf16, #tpu.memory_space<vmem>>, vector<128x128xbf16>
    %4 = arith.extf %3 : vector<128x128xbf16> to vector<128x128xf32>
    %c0_2 = arith.constant 0 : index
    %c0_3 = arith.constant 0 : index
    %5 = vector.load %arg3[%c0_2, %c0_3] : memref<8x128xf32, #tpu.memory_space<vmem>>, vector<8x128xf32>
    %c0_4 = arith.constant 0 : index
    %c0_5 = arith.constant 0 : index
    %6 = vector.load %arg4[%c0_4, %c0_5] : memref<8x128xf32, #tpu.memory_space<vmem>>, vector<8x128xf32>
    %7 = arith.subf %5, %6 : vector<8x128xf32>
    %cst = arith.constant 0.000000e+00 : f32
    %8 = vector.broadcast %cst : f32 to vector<8x1xf32>
    %cst_6 = arith.constant dense<0.000000e+00> : vector<8x128xf32>
    %9 = tpu.matmul %7, %4, %cst_6 {dimension_numbers = #tpu.dot_dimension_numbers<[1], [0], [0], [1], [0, 0, 1, 1], [], []>} : vector<8x128xf32>, vector<128x128xf32>, vector<8x128xf32> -> vector<8x128xf32>
    %10 = arith.mulf %9, %9 : vector<8x128xf32>
    %cst_7 = arith.constant dense<0.000000e+00> : vector<8xf32>
    %11 = vector.multi_reduction <add>, %10, %cst_7 [1] : vector<8x128xf32> to vector<8xf32>
    %12 = vector.shape_cast %11 : vector<8xf32> to vector<8x1xf32>
    %13 = arith.addf %8, %12 : vector<8x1xf32>
    %c0_8 = arith.constant 0 : index
    %c0_9 = arith.constant 0 : index
    %14 = vector.load %arg6[%c0_8, %c0_9] : memref<8x1xf32, #tpu.memory_space<vmem>>, vector<8x1xf32>
    %15 = arith.addf %14, %13 : vector<8x1xf32>
    %c0_10 = arith.constant 0 : index
    %c0_11 = arith.constant 0 : index
    %16 = vector.load %arg6[%c0_10, %c0_11] : memref<8x1xf32, #tpu.memory_space<vmem>>, vector<8x1xf32>
    tpu.vector_store %arg6[%c0_10, %c0_11], %15 {strides = array<i32>} : memref<8x1xf32, #tpu.memory_space<vmem>>, vector<8x1xf32>,
    %c0_i32_12 = arith.constant 0 : i32
    %17 = arith.cmpi eq, %arg1, %c0_i32_12 : i32
    %18 = arith.extui %17 : i1 to i32
    %c0_i32_13 = arith.constant 0 : i32
    %19 = arith.cmpi ne, %18, %c0_i32_13 : i32
    scf.if %19 {
      %c0_14 = arith.constant 0 : index
      %c0_15 = arith.constant 0 : index
      %20 = vector.load %arg6[%c0_14, %c0_15] : memref<8x1xf32, #tpu.memory_space<vmem>>, vector<8x1xf32>
      %21 = vector.shape_cast %20 : vector<8x1xf32> to vector<1x8x1xf32>
      %cst_16 = arith.constant dense<0.000000e+00> : vector<1xf32>
      %22 = vector.multi_reduction <add>, %21, %cst_16 [1, 2] : vector<1x8x1xf32> to vector<1xf32>
      %23 = vector.shape_cast %22 : vector<1xf32> to vector<1x1x1xf32>
      %24 = vector.extract %23[0, 0, 0] : f32 from vector<1x1x1xf32>
      %c0_17 = arith.constant 0 : index
      %c0_18 = arith.constant 0 : index
      %25 = memref.load %arg5[%c0_17, %c0_18] : memref<1x1xf32, #tpu.memory_space<smem>>
      memref.store %24, %arg5[%c0_17, %c0_18] : memref<1x1xf32, #tpu.memory_space<smem>>
    } else {
    }
    return
  }
  func.func @transform_0(%arg0: i32, %arg1: i32) -> (i32, i32) {
    %c0_i32 = arith.constant 0 : i32
    %c0_i32_0 = arith.constant 0 : i32
    %c0_i32_1 = arith.constant 0 : i32
    return %c0_i32, %c0_i32_0 : i32, i32
  }
  func.func @transform_1(%arg0: i32, %arg1: i32) -> (i32, i32) {
    %c1_i32 = arith.constant 1 : i32
    %0 = arith.muli %arg0, %c1_i32 : i32
    %1 = arith.addi %0, %arg1 : i32
    %c0_i32 = arith.constant 0 : i32
    %c0_i32_0 = arith.constant 0 : i32
    return %1, %c0_i32 : i32, i32
  }
  func.func @transform_2(%arg0: i32, %arg1: i32) -> (i32, i32) {
    %c1_i32 = arith.constant 1 : i32
    %0 = arith.muli %arg0, %c1_i32 : i32
    %1 = arith.addi %0, %arg1 : i32
    %c0_i32 = arith.constant 0 : i32
    %c0_i32_0 = arith.constant 0 : i32
    return %1, %c0_i32 : i32, i32
  }
  func.func @transform_3(%arg0: i32, %arg1: i32) -> (i32, i32) {
    %c0_i32 = arith.constant 0 : i32
    %c0_i32_0 = arith.constant 0 : i32
    return %arg0, %c0_i32 : i32, i32
  }
}

</mosaic_0001>

<llo_original>
// kernel: tpu_custom_call.1
$region0: #{tpu_custom_call.1}
  #allocation0 [shape = 'u32[]', space=smem, size = 0x4, offset = 0x4, fixed_abs, tag = 'smem constant byte address 0x4 - core index']
  #allocation1 [shape = 'u32[144,128]{1,0:T(1,128)}', space=vmem, size = 0x12000, scoped, tag = 'internal scratch']
  #allocation2 [shape = 'f32[8,1]{1,0:T(8,128)}', space=vmem, size = 0x1000, scoped, tag = 'scratch operand']
  %s0 = inlined_call_operand.hbm [shape: bf16[128,128], index: 0, kind: input, shape index: {}]
  %s1 = inlined_call_operand.hbm [shape: f32[8,128], index: 1, kind: input, shape index: {}]
  %s2 = inlined_call_operand.hbm [shape: f32[8,128], index: 2, kind: input, shape index: {}]
  %s3 = inlined_call_operand.hbm [shape: f32[1,1], index: 3, kind: output, shape index: {}]
  %s4 = sld [smem:[#allocation0]]
  $region42: #{tpu_custom_call.1} parent=0
    _
  %s6 = ssub.s32 1, %s4
  %s7 = scalar_select 0, %s6, %s4
  $region1: #{tpu_custom_call.1} parent=0
    #allocation3 [shape = 'u8[32768]{0}', space=vmem, size = 0x8000, scoped, tag = 'input window, operand 0, single buffered']
    #allocation4 [shape = 's32[1]{0}', space=sflag, size = 0x4, scoped, tag = 'scoped memory for tpu_custom_call.1']
    #allocation5 [shape = 's32[1]{0}', space=sflag, size = 0x4, scoped, tag = 'scoped memory for tpu_custom_call.1']
    #allocation6 [shape = 'u8[4096]{0}', space=vmem, size = 0x1000, scoped, tag = 'input window, operand 1, single buffered']
    #allocation7 [shape = 's32[1]{0}', space=sflag, size = 0x4, scoped, tag = 'scoped memory for tpu_custom_call.1']
    #allocation8 [shape = 'u8[4096]{0}', space=vmem, size = 0x1000, scoped, tag = 'input window, operand 2, single buffered']
    #allocation9 [shape = 'u8[512]{0}', space=smem, size = 0x200, scoped, tag = 'output window, operand 0, single buffered']
    %8 = vsyncpa [#allocation4], 0
    %9 = vsyncpa [#allocation7], 0
    %10 = vsyncpa [#allocation5], 0
    // Predicated region
    $region2: #{tpu_custom_call.1} parent=1 // pred_check
      _
    $region3: #{tpu_custom_call.1} parent=1 // pred_check_branch
      %12 = sbr.rel (0) target = $region5
    $region4: #{tpu_custom_call.1} parent=1 // pred_region
      %s14 = ssub.s32 1024, 1024
      %15 = vsyncadd [#allocation4], %s14
      %s16 = sshll.u32 [#allocation3], 4
      %s17 = int_to_ptr.vmem [resolvable:$true] %s16
      %22 = dma.hbm_to_vmem [thread:$0]  %s0, 1024, %s17, [#allocation4], 64, 64, 4
    $region5: #{tpu_custom_call.1} parent=1 // pred_fallthru
      _
    // Predicated region
    $region6: #{tpu_custom_call.1} parent=1 // pred_check
      _
    $region7: #{tpu_custom_call.1} parent=1 // pred_check_branch
      %24 = sbr.rel (0) target = $region9
    $region8: #{tpu_custom_call.1} parent=1 // pred_region
      %s25 = sadd.s32 0, 0
      %s27 = ssub.s32 128, 128
      %28 = vsyncadd [#allocation7], %s27
      %s29 = smul.addr %s25, 128
      %s30 = scalar_lea.hbm %s1, %s29
      %s32 = sshll.u32 [#allocation6], 4
      %s33 = int_to_ptr.vmem [resolvable:$true] %s32
      %35 = dma.hbm_to_vmem [thread:$0]  %s30, 128, %s33, [#allocation7]
    $region9: #{tpu_custom_call.1} parent=1 // pred_fallthru
      _
    // Predicated region
    $region10: #{tpu_custom_call.1} parent=1 // pred_check
      _
    $region11: #{tpu_custom_call.1} parent=1 // pred_check_branch
      %37 = sbr.rel (0) target = $region13
    $region12: #{tpu_custom_call.1} parent=1 // pred_region
      %s38 = sadd.s32 0, 0
      %s40 = ssub.s32 128, 128
      %41 = vsyncadd [#allocation7], %s40
      %s42 = smul.addr %s38, 128
      %s43 = scalar_lea.hbm %s2, %s42
      %s45 = sshll.u32 [#allocation8], 4
      %s46 = int_to_ptr.vmem [resolvable:$true] %s45
      %48 = dma.hbm_to_vmem [thread:$0]  %s43, 128, %s46, [#allocation7]
    $region13: #{tpu_custom_call.1} parent=1 // pred_fallthru
      _
    // Predicated region
    $region14: #{tpu_custom_call.1} parent=1 // pred_check
      _
    $region15: #{tpu_custom_call.1} parent=1 // pred_check_branch
      %50 = sbr.rel (0) target = $region17
    $region16: #{tpu_custom_call.1} parent=1 // pred_region
      %51 = dma.done [#allocation4], 1024
    $region17: #{tpu_custom_call.1} parent=1 // pred_fallthru
      _
    // Predicated region
    $region18: #{tpu_custom_call.1} parent=1 // pred_check
      _
    $region19: #{tpu_custom_call.1} parent=1 // pred_check_branch
      %53 = sbr.rel (0) target = $region21
    $region20: #{tpu_custom_call.1} parent=1 // pred_region
      %54 = dma.done [#allocation7], 128
    $region21: #{tpu_custom_call.1} parent=1 // pred_fallthru
      _
    // Predicated region
    $region22: #{tpu_custom_call.1} parent=1 // pred_check
      _
    $region23: #{tpu_custom_call.1} parent=1 // pred_check_branch
      %56 = sbr.rel (0) target = $region25
    $region24: #{tpu_custom_call.1} parent=1 // pred_region
      %57 = dma.done [#allocation7], 128
    $region25: #{tpu_custom_call.1} parent=1 // pred_fallthru
      _
    %s58 = sadd.s32 0, 0
    %s59 = sadd.s32 0, 0
    %p60 = scmp.eq.s32.totalorder 0, 0
    // Predicated region
    $region26: #{tpu_custom_call.1} parent=1 // pred_check
      %p61 = pneg %p60
    $region27: #{tpu_custom_call.1} parent=1 // pred_check_branch
      %63 = sbr.rel (%p61) target = $region29
    $region28: #{tpu_custom_call.1} parent=1 // pred_region
      %vm64 = vcmask 7168
      %65 = vst.msk [vmem:[#allocation2] sm:$0xff] %vm64, 0.0
    $region29: #{tpu_custom_call.1} parent=1 // pred_fallthru
      _
    %v66 = vld [vmem:[#allocation3] sm:$0xf]
    %v67 = vld [vmem:[#allocation3 + $0x4] sm:$0xf]
    %v68 = vld [vmem:[#allocation3 + $0x8] sm:$0xf]
    %v69 = vld [vmem:[#allocation3 + $0xc] sm:$0xf]
    %v70 = vld [vmem:[#allocation3 + $0x10] sm:$0xf]
    %v71 = vld [vmem:[#allocation3 + $0x14] sm:$0xf]
    %v72 = vld [vmem:[#allocation3 + $0x18] sm:$0xf]
    %v73 = vld [vmem:[#allocation3 + $0x1c] sm:$0xf]
    %v74 = vld [vmem:[#allocation3 + $0x20] sm:$0xf]
    %v75 = vld [vmem:[#allocation3 + $0x24] sm:$0xf]
    %v76 = vld [vmem:[#allocation3 + $0x28] sm:$0xf]
    %v77 = vld [vmem:[#allocation3 + $0x2c] sm:$0xf]
    %v78 = vld [vmem:[#allocation3 + $0x30] sm:$0xf]
    %v79 = vld [vmem:[#allocation3 + $0x34] sm:$0xf]
    %v80 = vld [vmem:[#allocation3 + $0x38] sm:$0xf]
    %v81 = vld [vmem:[#allocation3 + $0x3c] sm:$0xf]
    %v82 = vunpack.c.l.bf16 %v66
    %v83 = vunpack.c.l.bf16 %v67
    %v84 = vunpack.c.l.bf16 %v68
    %v85 = vunpack.c.l.bf16 %v69
    %v86 = vunpack.c.l.bf16 %v70
    %v87 = vunpack.c.l.bf16 %v71
    %v88 = vunpack.c.l.bf16 %v72
    %v89 = vunpack.c.l.bf16 %v73
    %v90 = vunpack.c.l.bf16 %v74
    %v91 = vunpack.c.l.bf16 %v75
    %v92 = vunpack.c.l.bf16 %v76
    %v93 = vunpack.c.l.bf16 %v77
    %v94 = vunpack.c.l.bf16 %v78
    %v95 = vunpack.c.l.bf16 %v79
    %v96 = vunpack.c.l.bf16 %v80
    %v97 = vunpack.c.l.bf16 %v81
    %v98 = vld [vmem:[#allocation6] sm:$0xff]
    %v99 = vld [vmem:[#allocation8] sm:$0xff]
    %v100 = vsub.f32 %v98, %v99
    %101 = vmatprep.subr.mxu0 0.0
    %102 = vmatpush1.msra.mxu0 %v82
    %103 = vmatprep.subr.mxu0 0.0
    %104 = vmatpush1.msra.mxu0 %v83
    %105 = vmatprep.subr.mxu0 0.0
    %106 = vmatpush1.msra.mxu0 %v84
    %107 = vmatprep.subr.mxu0 0.0
    %108 = vmatpush1.msra.mxu0 %v85
    %109 = vmatprep.subr.mxu0 0.0
    %110 = vmatpush1.msra.mxu0 %v86
    %111 = vmatprep.subr.mxu0 0.0
    %112 = vmatpush1.msra.mxu0 %v87
    %113 = vmatprep.subr.mxu0 0.0
    %114 = vmatpush1.msra.mxu0 %v88
    %115 = vmatprep.subr.mxu0 0.0
    %116 = vmatpush1.msra.mxu0 %v89
    %117 = vmatprep.subr.mxu0 0.0
    %118 = vmatpush1.msra.mxu0 %v90
    %119 = vmatprep.subr.mxu0 0.0
    %120 = vmatpush1.msra.mxu0 %v91
    %121 = vmatprep.subr.mxu0 0.0
    %122 = vmatpush1.msra.mxu0 %v92
    %123 = vmatprep.subr.mxu0 0.0
    %124 = vmatpush1.msra.mxu0 %v93
    %125 = vmatprep.subr.mxu0 0.0
    %126 = vmatpush1.msra.mxu0 %v94
    %127 = vmatprep.subr.mxu0 0.0
    %128 = vmatpush1.msra.mxu0 %v95
    %129 = vmatprep.subr.mxu0 0.0
    %130 = vmatpush1.msra.mxu0 %v96
    %131 = vmatprep.subr.mxu0 0.0
    %132 = vmatpush1.msra.mxu0 %v97
    %133 = vmatprep.subr.mxu0 0.0
    %134 = vmatpush1.msra.mxu0 0.0
    %135 = vmatprep.subr.mxu0 0.0
    %136 = vmatpush1.msra.mxu0 0.0
    %137 = vmatprep.subr.mxu0 0.0
    %138 = vmatpush1.msra.mxu0 0.0
    %139 = vmatprep.subr.mxu0 0.0
    %140 = vmatpush1.msra.mxu0 0.0
    %141 = vmatprep.subr.mxu0 0.0
    %142 = vmatpush1.msra.mxu0 0.0
    %143 = vmatprep.subr.mxu0 0.0
    %144 = vmatpush1.msra.mxu0 0.0
    %145 = vmatprep.subr.mxu0 0.0
    %146 = vmatpush1.msra.mxu0 0.0
    %147 = vmatprep.subr.mxu0 0.0
    %148 = vmatpush1.msra.mxu0 0.0
    %149 = vmatprep.subr.mxu0 0.0
    %150 = vmatpush1.msra.mxu0 0.0
    %151 = vmatprep.subr.mxu0 0.0
    %152 = vmatpush1.msra.mxu0 0.0
    %153 = vmatprep.subr.mxu0 0.0
    %154 = vmatpush1.msra.mxu0 0.0
    %155 = vmatprep.subr.mxu0 0.0
    %156 = vmatpush1.msra.mxu0 0.0
    %157 = vmatprep.subr.mxu0 0.0
    %158 = vmatpush1.msra.mxu0 0.0
    %159 = vmatprep.subr.mxu0 0.0
    %160 = vmatpush1.msra.mxu0 0.0
    %161 = vmatprep.subr.mxu0 0.0
    %162 = vmatpush1.msra.mxu0 0.0
    %163 = vmatprep.subr.mxu0 0.0
    %164 = vmatpush1.msra.mxu0 0.0
    %165 = vmatprep.mubr.f32.mxu0 0.0
    %166 = vmatmul.mubr.f32.gmra.mrb[0].mxu0 %v100
    %v167 = vpop.f32.mrb[0].mxu0
    %v168 = vadd.f32 0.0, %v167
    %v169 = vpop.f32.mrb[0].mxu0
    %170 = vdwg.mxu0
    %v171 = vmul.f32 %v168, %v168
    %172 = vadd.xlane.f32.xlu0 %v171
    %v173 = vpop.xlane.xlu0 %172
    %v174 = vadd.f32 %v173, 0.0
    %v175 = vld [vmem:[#allocation2] sm:$0xff]
    %v176 = vadd.f32 %v175, %v174
    %vm177 = vcmask 7168
    %178 = vst.msk [vmem:[#allocation2] sm:$0xff] %vm177, %v176
    // Predicated region
    $region30: #{tpu_custom_call.1} parent=1 // pred_check
      %p179 = pneg %p60
    $region31: #{tpu_custom_call.1} parent=1 // pred_check_branch
      %181 = sbr.rel (%p179) target = $region33
    $region32: #{tpu_custom_call.1} parent=1 // pred_region
      %v182 = vld [vmem:[#allocation2] sm:$0xff]
      %v183 = vsel %vm177, %v182, 0.0
      %184 = vadd.xlane.f32.xlu0 %v183
      %v185 = vpop.xlane.xlu0 %184
      %v186 = vrot.slane %v185, 4
      %v187 = vadd.f32 %v185, %v186
      %v188 = vrot.slane %v187, 2
      %v189 = vadd.f32 %v187, %v188
      %v190 = vrot.slane %v189, 1
      %v191 = vadd.f32 %v189, %v190
      %s192 = vtos %v191
      %s193 = scalar_lea.smem [#allocation9], 0
      %194 = sst [smem:[%s193]] %s192
    $region33: #{tpu_custom_call.1} parent=1 // pred_fallthru
      _
    // Predicated region
    $region34: #{tpu_custom_call.1} parent=1 // pred_check
      _
    $region35: #{tpu_custom_call.1} parent=1 // pred_check_branch
      %196 = sbr.rel (0) target = $region37
    $region36: #{tpu_custom_call.1} parent=1 // pred_region
      %s198 = ssub.s32 16, 16
      %199 = vsyncadd [#allocation5], %s198
      %202 = dma.smem_to_hbm [#allocation9], 16, %s3, [#allocation5]
    $region37: #{tpu_custom_call.1} parent=1 // pred_fallthru
      _
    // Predicated region
    $region38: #{tpu_custom_call.1} parent=1 // pred_check
      _
    $region39: #{tpu_custom_call.1} parent=1 // pred_check_branch
      %204 = sbr.rel (0) target = $region41
    $region40: #{tpu_custom_call.1} parent=1 // pred_region
      %205 = dma.done [#allocation5], 16
    $region41: #{tpu_custom_call.1} parent=1 // pred_fallthru
      _
    %206 = sfence
    %207 = vsyncpa [#allocation4], 1
    %208 = vsyncpa [#allocation7], 1
    %209 = vsyncpa [#allocation5], 1

</llo_original>
